<compile_context>
chip_gen: v7x
topology: tpu7x:2x2x1
jax: 0.10.0
libtpu: 0.0.40
codegen_flags: <defaults>
</compile_context>

<pallas_src>
import functools

import jax
import jax.numpy as jnp
from jax.experimental import pallas as pl
from jax.experimental.pallas import tpu as pltpu

LANE = 128


def _iou_loss_kernel(inv_ref, pred_ref, gt_ref, mask_ref, out_ref, *,
                     rows, tr, need_valid_mask):
    f32 = jnp.float32
    inv_maxm = inv_ref[0, 0]                     # scalar 1 / mask.max()  (SMEM)
    m = mask_ref[0, 0].astype(f32)               # (TR, 128) dense mask tile

    # Per-channel dense (TR, 128) tiles; channel axis is 3rd-from-last, so
    # each slice is a contiguous VMEM slab.  Cast to f32 right after load
    # (inputs may be streamed as bf16/fp16).
    t = pred_ref[0, 0].astype(f32)
    b = pred_ref[0, 1].astype(f32)
    l = pred_ref[0, 2].astype(f32)
    r = pred_ref[0, 3].astype(f32)
    t_ = gt_ref[0, 0].astype(f32)
    b_ = gt_ref[0, 1].astype(f32)
    l_ = gt_ref[0, 2].astype(f32)
    r_ = gt_ref[0, 3].astype(f32)

    # Mask factored out of the per-channel products (valid for mask >= 0):
    #   X = m^2 * X0,  X_ = m^2 * X0_,  I = m^2 * I0.
    X0 = (t + b) * (l + r)
    X0_ = (t_ + b_) * (l_ + r_)
    I0 = ((jnp.minimum(t, t_) + jnp.minimum(b, b_)) *
          (jnp.minimum(l, l_) + jnp.minimum(r, r_)))
    m2 = m * m

    # invert_mask(mask) = -(m - max)/max = 1 - m * (1/max); divide hoisted to
    # one scalar reciprocal on the host.
    inverted_mask = 1.0 - m * inv_maxm

    I = m2 * I0 + inverted_mask
    U = m2 * (X0 + X0_ - I0) + inverted_mask
    # -log(I/U) == log(U) - log(I): no VALU divide, two EUP logs instead.
    loss = jnp.log(U) - jnp.log(I)               # (TR, 128)

    if need_valid_mask:
        # Only the last row tile overhangs the array; rows past R read
        # out-of-bounds garbage, so select (never multiply-mask) them away.
        is_last = pl.program_id(1) == pl.num_programs(1) - 1

        @pl.when(jnp.logical_not(is_last))
        def _():
            out_ref[0, 0] = jnp.sum(loss, axis=0, keepdims=True)

        @pl.when(is_last)
        def _():
            row = jax.lax.broadcasted_iota(jnp.int32, (tr, LANE), 0)
            valid = (pl.program_id(1) * tr + row) < rows
            out_ref[0, 0] = jnp.sum(jnp.where(valid, loss, jnp.float32(0.0)),
                                    axis=0, keepdims=True)
    else:
        # Lane padding (if any) is real zeros: m = 0 gives loss exactly 0.
        out_ref[0, 0] = jnp.sum(loss, axis=0, keepdims=True)


def iou_loss(pred_loc, gt_loc, mask, *, block_rows=1024):
    """Pallas equivalent of IoULoss().forward(pred_loc, gt_loc, mask).

    pred_loc, gt_loc: (N, 4, H, W) float (any float dtype; streamed natively)
    mask:             (N, 1, H, W) float, assumed >= 0
    returns scalar float32
    """
    N, C, H, W = pred_loc.shape
    assert C == 4, "pred_loc must have 4 box-side channels"
    assert mask.shape == (N, 1, H, W)
    HW = H * W

    R = pl.cdiv(HW, LANE)           # rows of 128 lanes per sample
    HWp = R * LANE

    # Free reshapes only; keep the native dtype (no wrapper-side upcast pass).
    pred3 = pred_loc.reshape(N, 4, HW)
    gt3 = gt_loc.reshape(N, 4, HW)
    mask3 = mask.reshape(N, 1, HW)
    if HWp != HW:                   # rare: H*W not a multiple of 128
        pad = HWp - HW
        pred3 = jnp.pad(pred3, ((0, 0), (0, 0), (0, pad)))
        gt3 = jnp.pad(gt3, ((0, 0), (0, 0), (0, pad)))
        mask3 = jnp.pad(mask3, ((0, 0), (0, 0), (0, pad)))
    pred4 = pred3.reshape(N, 4, R, LANE)
    gt4 = gt3.reshape(N, 4, R, LANE)
    mask4 = mask3.reshape(N, 1, R, LANE)

    # Row-tile size: multiple of 16 (bf16 sublane packing).  TR=1024 streams
    # ~4.5 MiB of f32 per grid step (double-buffered ~9 MiB + spill), which
    # amortizes the ~0.35 us per-step overhead on all generations while
    # staying well under the 48 MiB VMEM limit (v7x physical VMEM is 64 MiB).
    # Sweep block_rows in {512, 1024, 2048} if profiling a specific chip.
    if R <= block_rows:
        TR = R
    else:
        TR = max(16, (block_rows // 16) * 16)
    NR = pl.cdiv(R, TR)
    # Lane padding contributes exactly 0 loss; only a row overhang needs a
    # select, and only in the last row tile (gated in-kernel with pl.when).
    need_valid_mask = (R % TR) != 0

    # Max on the native-dtype mask (max is exact; no extra f32 pass), then a
    # single scalar reciprocal in f32.
    inv_maxm = (1.0 / jnp.max(mask).astype(jnp.float32)).reshape(1, 1)

    kernel = functools.partial(_iou_loss_kernel, rows=R, tr=TR,
                               need_valid_mask=need_valid_mask)

    partials = pl.pallas_call(
        kernel,
        out_shape=jax.ShapeDtypeStruct((N, NR, 1, LANE), jnp.float32),
        grid_spec=pltpu.PrefetchScalarGridSpec(
            num_scalar_prefetch=0,
            grid=(N, NR),
            in_specs=[
                pl.BlockSpec(memory_space=pltpu.MemorySpace.SMEM),          # 1/max
                pl.BlockSpec((1, 4, TR, LANE), lambda n, r: (n, 0, r, 0)),  # pred
                pl.BlockSpec((1, 4, TR, LANE), lambda n, r: (n, 0, r, 0)),  # gt
                pl.BlockSpec((1, 1, TR, LANE), lambda n, r: (n, 0, r, 0)),  # mask
            ],
            out_specs=pl.BlockSpec((1, 1, 1, LANE), lambda n, r: (n, r, 0, 0)),
        ),
        compiler_params=pltpu.CompilerParams(
            # No carried state on either axis: "parallel" is the documented
            # megacore annotation, letting v7x shard the grid across both TCs.
            dimension_semantics=("parallel", "parallel"),
            vmem_limit_bytes=48 * 1024 * 1024),
    )(inv_maxm, pred4, gt4, mask4)

    return jnp.sum(partials) / jnp.float32(N * HW)


def _iou_loss_ref(pred_loc, gt_loc, mask):
    """Pure-JAX reference mirroring the PyTorch forward, for sanity checking."""
    pred_loc = mask * pred_loc
    gt_loc = mask * gt_loc
    xt, xb, xl, xr = jnp.split(pred_loc, 4, axis=1)
    xt_, xb_, xl_, xr_ = jnp.split(gt_loc, 4, axis=1)
    X = (xt + xb) * (xl + xr)
    X_ = (xt_ + xb_) * (xl_ + xr_)
    Ih = jnp.minimum(xt, xt_) + jnp.minimum(xb, xb_)
    Iw = jnp.minimum(xl, xl_) + jnp.minimum(xr, xr_)
    I = Ih * Iw
    mmax = mask.max()
    inv = -(mask - mmax) / mmax
    U = X + X_ - I
    I = I + inv
    U = U + inv
    return jnp.mean(-jnp.log(I / U))


if __name__ == "__main__":
    key = jax.random.PRNGKey(0)
    k1, k2, k3 = jax.random.split(key, 3)

    N, C, H, W = 2, 4, 16, 16
    # Positive box-side distances so IoU in (0, 1] and log is finite.
    pred = jax.random.uniform(k1, (N, C, H, W), jnp.float32, 0.5, 2.0)
    gt = jax.random.uniform(k2, (N, C, H, W), jnp.float32, 0.5, 2.0)
    mask = jax.random.uniform(k3, (N, 1, H, W), jnp.float32, 0.25, 1.0)

    loss = jax.block_until_ready(iou_loss(pred, gt, mask))
    ref = jax.block_until_ready(_iou_loss_ref(pred, gt, mask))

    assert jnp.isfinite(loss), "kernel produced non-finite loss"
    # Slightly loosened vs strict ulp-identity: the kernel reassociates the
    # mask (m^2 factoring) and uses log(U)-log(I) instead of -log(I/U); both
    # introduce only ~1e-6-level absolute differences in the mean.
    assert jnp.allclose(loss, ref, rtol=2e-5, atol=2e-5), (loss, ref)
    print("KERNEL_OK")
</pallas_src>

<mosaic_0001>
module attributes {stable_mosaic.version = 11 : i64} {
  func.func @_iou_loss_kernel(%arg0: i32, %arg1: i32, %arg2: memref<1x1xf32, #tpu.memory_space<smem>>, %arg3: memref<1x4x2x128xf32, #tpu.memory_space<vmem>>, %arg4: memref<1x4x2x128xf32, #tpu.memory_space<vmem>>, %arg5: memref<1x1x2x128xf32, #tpu.memory_space<vmem>>, %arg6: memref<1x1x1x128xf32, #tpu.memory_space<vmem>>) attributes {dimension_semantics = [#tpu.dimension_semantics<parallel>, #tpu.dimension_semantics<parallel>], iteration_bounds = array<i64: 2, 1>, scalar_prefetch = 0 : i64, scratch_operands = 0 : i64, tpu.core_type = #tpu.core_type<tc>, window_params = [{transform_indices = @transform_0, window_bounds = array<i64: 1, 1>}, {transform_indices = @transform_1, window_bounds = array<i64: 1, 4, 2, 128>}, {transform_indices = @transform_2, window_bounds = array<i64: 1, 4, 2, 128>}, {transform_indices = @transform_3, window_bounds = array<i64: 1, 1, 2, 128>}, {transform_indices = @transform_4, window_bounds = array<i64: 1, 1, 1, 128>}]} {
    %c0 = arith.constant 0 : index
    %c0_0 = arith.constant 0 : index
    %0 = memref.load %arg2[%c0, %c0_0] : memref<1x1xf32, #tpu.memory_space<smem>>
    %c0_1 = arith.constant 0 : index
    %c0_2 = arith.constant 0 : index
    %c0_3 = arith.constant 0 : index
    %c0_4 = arith.constant 0 : index
    %1 = vector.load %arg5[%c0_1, %c0_2, %c0_3, %c0_4] : memref<1x1x2x128xf32, #tpu.memory_space<vmem>>, vector<1x1x2x128xf32>
    %2 = vector.shape_cast %1 : vector<1x1x2x128xf32> to vector<2x128xf32>
    %c0_5 = arith.constant 0 : index
    %c0_6 = arith.constant 0 : index
    %c0_7 = arith.constant 0 : index
    %c0_8 = arith.constant 0 : index
    %3 = vector.load %arg3[%c0_5, %c0_6, %c0_7, %c0_8] : memref<1x4x2x128xf32, #tpu.memory_space<vmem>>, vector<1x1x2x128xf32>
    %4 = vector.shape_cast %3 : vector<1x1x2x128xf32> to vector<2x128xf32>
    %c0_9 = arith.constant 0 : index
    %c1 = arith.constant 1 : index
    %c0_10 = arith.constant 0 : index
    %c0_11 = arith.constant 0 : index
    %5 = vector.load %arg3[%c0_9, %c1, %c0_10, %c0_11] : memref<1x4x2x128xf32, #tpu.memory_space<vmem>>, vector<1x1x2x128xf32>
    %6 = vector.shape_cast %5 : vector<1x1x2x128xf32> to vector<2x128xf32>
    %c0_12 = arith.constant 0 : index
    %c2 = arith.constant 2 : index
    %c0_13 = arith.constant 0 : index
    %c0_14 = arith.constant 0 : index
    %7 = vector.load %arg3[%c0_12, %c2, %c0_13, %c0_14] : memref<1x4x2x128xf32, #tpu.memory_space<vmem>>, vector<1x1x2x128xf32>
    %8 = vector.shape_cast %7 : vector<1x1x2x128xf32> to vector<2x128xf32>
    %c0_15 = arith.constant 0 : index
    %c3 = arith.constant 3 : index
    %c0_16 = arith.constant 0 : index
    %c0_17 = arith.constant 0 : index
    %9 = vector.load %arg3[%c0_15, %c3, %c0_16, %c0_17] : memref<1x4x2x128xf32, #tpu.memory_space<vmem>>, vector<1x1x2x128xf32>
    %10 = vector.shape_cast %9 : vector<1x1x2x128xf32> to vector<2x128xf32>
    %c0_18 = arith.constant 0 : index
    %c0_19 = arith.constant 0 : index
    %c0_20 = arith.constant 0 : index
    %c0_21 = arith.constant 0 : index
    %11 = vector.load %arg4[%c0_18, %c0_19, %c0_20, %c0_21] : memref<1x4x2x128xf32, #tpu.memory_space<vmem>>, vector<1x1x2x128xf32>
    %12 = vector.shape_cast %11 : vector<1x1x2x128xf32> to vector<2x128xf32>
    %c0_22 = arith.constant 0 : index
    %c1_23 = arith.constant 1 : index
    %c0_24 = arith.constant 0 : index
    %c0_25 = arith.constant 0 : index
    %13 = vector.load %arg4[%c0_22, %c1_23, %c0_24, %c0_25] : memref<1x4x2x128xf32, #tpu.memory_space<vmem>>, vector<1x1x2x128xf32>
    %14 = vector.shape_cast %13 : vector<1x1x2x128xf32> to vector<2x128xf32>
    %c0_26 = arith.constant 0 : index
    %c2_27 = arith.constant 2 : index
    %c0_28 = arith.constant 0 : index
    %c0_29 = arith.constant 0 : index
    %15 = vector.load %arg4[%c0_26, %c2_27, %c0_28, %c0_29] : memref<1x4x2x128xf32, #tpu.memory_space<vmem>>, vector<1x1x2x128xf32>
    %16 = vector.shape_cast %15 : vector<1x1x2x128xf32> to vector<2x128xf32>
    %c0_30 = arith.constant 0 : index
    %c3_31 = arith.constant 3 : index
    %c0_32 = arith.constant 0 : index
    %c0_33 = arith.constant 0 : index
    %17 = vector.load %arg4[%c0_30, %c3_31, %c0_32, %c0_33] : memref<1x4x2x128xf32, #tpu.memory_space<vmem>>, vector<1x1x2x128xf32>
    %18 = vector.shape_cast %17 : vector<1x1x2x128xf32> to vector<2x128xf32>
    %19 = arith.addf %4, %6 : vector<2x128xf32>
    %20 = arith.addf %8, %10 : vector<2x128xf32>
    %21 = arith.mulf %19, %20 : vector<2x128xf32>
    %22 = arith.addf %12, %14 : vector<2x128xf32>
    %23 = arith.addf %16, %18 : vector<2x128xf32>
    %24 = arith.mulf %22, %23 : vector<2x128xf32>
    %25 = arith.minimumf %4, %12 : vector<2x128xf32>
    %26 = arith.minimumf %6, %14 : vector<2x128xf32>
    %27 = arith.addf %25, %26 : vector<2x128xf32>
    %28 = arith.minimumf %8, %16 : vector<2x128xf32>
    %29 = arith.minimumf %10, %18 : vector<2x128xf32>
    %30 = arith.addf %28, %29 : vector<2x128xf32>
    %31 = arith.mulf %27, %30 : vector<2x128xf32>
    %32 = arith.mulf %2, %2 : vector<2x128xf32>
    %33 = vector.broadcast %0 : f32 to vector<2x128xf32>
    %34 = arith.mulf %2, %33 : vector<2x128xf32>
    %cst = arith.constant 1.000000e+00 : f32
    %35 = vector.broadcast %cst : f32 to vector<2x128xf32>
    %36 = arith.subf %35, %34 : vector<2x128xf32>
    %37 = arith.mulf %32, %31 : vector<2x128xf32>
    %38 = arith.addf %37, %36 : vector<2x128xf32>
    %39 = arith.addf %21, %24 : vector<2x128xf32>
    %40 = arith.subf %39, %31 : vector<2x128xf32>
    %41 = arith.mulf %32, %40 : vector<2x128xf32>
    %42 = arith.addf %41, %36 : vector<2x128xf32>
    %43 = math.log %42 : vector<2x128xf32>
    %44 = math.log %38 : vector<2x128xf32>
    %45 = arith.subf %43, %44 : vector<2x128xf32>
    %cst_34 = arith.constant dense<0.000000e+00> : vector<128xf32>
    %46 = vector.multi_reduction <add>, %45, %cst_34 [0] : vector<2x128xf32> to vector<128xf32>
    %47 = vector.shape_cast %46 : vector<128xf32> to vector<1x128xf32>
    %c0_35 = arith.constant 0 : index
    %c0_36 = arith.constant 0 : index
    %c0_37 = arith.constant 0 : index
    %c0_38 = arith.constant 0 : index
    %48 = vector.load %arg6[%c0_35, %c0_36, %c0_37, %c0_38] : memref<1x1x1x128xf32, #tpu.memory_space<vmem>>, vector<1x1x1x128xf32>
    %49 = vector.shape_cast %48 : vector<1x1x1x128xf32> to vector<1x128xf32>
    %50 = vector.shape_cast %47 : vector<1x128xf32> to vector<1x1x1x128xf32>
    tpu.vector_store %arg6[%c0_35, %c0_36, %c0_37, %c0_38], %50 {strides = array<i32>} : memref<1x1x1x128xf32, #tpu.memory_space<vmem>>, vector<1x1x1x128xf32>,
    return
  }
  func.func @transform_0(%arg0: i32, %arg1: i32) -> (i32, i32) {
    %c0_i32 = arith.constant 0 : i32
    %c0_i32_0 = arith.constant 0 : i32
    %c0_i32_1 = arith.constant 0 : i32
    return %c0_i32, %c0_i32_0 : i32, i32
  }
  func.func @transform_1(%arg0: i32, %arg1: i32) -> (i32, i32, i32, i32) {
    %c0_i32 = arith.constant 0 : i32
    %c0_i32_0 = arith.constant 0 : i32
    %c0_i32_1 = arith.constant 0 : i32
    return %arg0, %c0_i32, %arg1, %c0_i32_0 : i32, i32, i32, i32
  }
  func.func @transform_2(%arg0: i32, %arg1: i32) -> (i32, i32, i32, i32) {
    %c0_i32 = arith.constant 0 : i32
    %c0_i32_0 = arith.constant 0 : i32
    %c0_i32_1 = arith.constant 0 : i32
    return %arg0, %c0_i32, %arg1, %c0_i32_0 : i32, i32, i32, i32
  }
  func.func @transform_3(%arg0: i32, %arg1: i32) -> (i32, i32, i32, i32) {
    %c0_i32 = arith.constant 0 : i32
    %c0_i32_0 = arith.constant 0 : i32
    %c0_i32_1 = arith.constant 0 : i32
    return %arg0, %c0_i32, %arg1, %c0_i32_0 : i32, i32, i32, i32
  }
  func.func @transform_4(%arg0: i32, %arg1: i32) -> (i32, i32, i32, i32) {
    %c0_i32 = arith.constant 0 : i32
    %c0_i32_0 = arith.constant 0 : i32
    %c0_i32_1 = arith.constant 0 : i32
    return %arg0, %arg1, %c0_i32, %c0_i32_0 : i32, i32, i32, i32
  }
}

</mosaic_0001>

<llo_original>
// kernel: tpu_custom_call.1
$region0: #{tpu_custom_call.1}
  #allocation0 [shape = 'u32[]', space=smem, size = 0x4, offset = 0x4, fixed_abs, tag = 'smem constant byte address 0x4 - core index']
  #allocation1 [shape = 'u32[144,128]{1,0:T(1,128)}', space=vmem, size = 0x12000, scoped, tag = 'internal scratch']
  #allocation2 [shape = 'f32[1,1]{1,0:T(1,128)S(6)}', space=smem, size = 0x200, scoped, tag = 'scoped memory for tpu_custom_call.1']
  %s0 = inlined_call_operand.<no memory space> [shape: f32[1,1], index: 0, kind: input, shape index: {}]
  %s1 = inlined_call_operand.hbm [shape: f32[2,4,2,128], index: 1, kind: input, shape index: {}]
  %s2 = inlined_call_operand.hbm [shape: f32[2,4,2,128], index: 2, kind: input, shape index: {}]
  %s3 = inlined_call_operand.vmem [shape: f32[2,1,2,128], index: 3, kind: input, shape index: {}]
  %s4 = inlined_call_operand.hbm [shape: f32[2,1,1,128], index: 4, kind: output, shape index: {}]
  %s5 = sld [smem:[#allocation0]]
  $region57: #{tpu_custom_call.1} parent=0
    _
  %s7 = ssub.s32 1, %s5
  %s8 = scalar_select 0, %s7, %s5
  %9 = sst [smem:[#allocation2]] %s0
  $region1: #{tpu_custom_call.1} parent=0
    #allocation3 [shape = 'u8[8192]{0}', space=vmem, size = 0x2000, scoped, tag = 'input window, operand 1']
    #allocation4 [shape = 's32[2]{0}', space=sflag, size = 0x8, scoped, tag = 'scoped memory for tpu_custom_call.1']
    #allocation5 [shape = 's32[2]{0}', space=sflag, size = 0x8, scoped, tag = 'scoped memory for tpu_custom_call.1']
    #allocation6 [shape = 'u8[8192]{0}', space=vmem, size = 0x2000, scoped, tag = 'input window, operand 2']
    #allocation7 [shape = 's32[2]{0}', space=sflag, size = 0x8, scoped, tag = 'scoped memory for tpu_custom_call.1']
    #allocation8 [shape = 'u8[1024]{0}', space=vmem, size = 0x400, scoped, tag = 'output window, operand 0']
    %10 = vsyncpa [#allocation4], 0
    %s11 = scalar_lea.sflag [#allocation4], 1
    %12 = vsyncpa %s11, 0
    %13 = vsyncpa [#allocation7], 0
    %s14 = scalar_lea.sflag [#allocation7], 1
    %15 = vsyncpa %s14, 0
    %16 = vsyncpa [#allocation5], 0
    %s17 = scalar_lea.sflag [#allocation5], 1
    %18 = vsyncpa %s17, 0
    loop: start=0, step=1, limit=4
    $region2: #{tpu_custom_call.1} parent=1 // loop_pre_header
      _
    $region3: #{tpu_custom_call.1} parent=1 // loop_header
      %s20 = sphi 0, %s24
      %p21 = scmp.ge.s32.totalorder %s20, 4
      %s27 = sphi 0, %s39
      %s28 = sphi 0, %s35
      %s29 = sphi 0, %s27
      %s30 = sphi 0, %s28
      %s31 = sphi 0, %s29
      %s32 = sphi 0, %s30
      %s40 = sphi 0, %s40
      %s42 = sphi 0, %s40
      %s43 = sphi 0, %s42
      %s57 = sphi 0, %s43
      %s65 = sphi 0, %s67
      %s68 = sphi 0, %s65
      %s69 = sphi 0, %s68
      %s85 = sphi 0, %s69
      %s93 = sphi 0, %s95
      %s96 = sphi 0, %s93
      %s97 = sphi 0, %s96
      %s113 = sphi 0, %s97
      %s121 = sphi 0, %s123
      %s124 = sphi 0, %s121
      %s125 = sphi 0, %s124
      %s141 = sphi 0, %s125
      %s149 = sphi 0, %s151
      %s152 = sphi 0, %s149
      %s153 = sphi 0, %s152
      %s169 = sphi 0, %s153
    $region4: #{tpu_custom_call.1} parent=1 // loop_header_branch
      %23 = sbr.rel (%p21) target = $region8
    $region5: #{tpu_custom_call.1} parent=1 // loop_body
      %s25 = ssub.s32 %s20, 1
      %s26 = ssub.s32 %s20, 2
      %s33 = sadd.s32 1, %s28
      %p34 = scmp.ge.s32.totalorder %s33, 1
      %s35 = scalar_select %p34, 0, %s33
      %s36 = sadd.s32 1, %s27
      %s37 = scalar_select %p34, %s36, %s27
      %p38 = scmp.ge.s32.totalorder %s37, 2
      %s39 = scalar_select %p38, 0, %s37
      %s41 = sadd.s32 %s40, 1
      %p44 = scmp.eq.s32.totalorder %s20, 1
      %p45 = scmp.ne.s32.totalorder %s40, %s42
      %p46 = scmp.eq.s32.totalorder %s20, 0
      %p47 = por %p45, %p46
      %p48 = scmp.ne.s32.totalorder %s40, %s42
      %p49 = scmp.eq.s32.totalorder %s25, 1
      %p50 = por %p48, %p49
      %p51 = scmp.ne.s32.totalorder %s42, %s43
      %p52 = scmp.eq.s32.totalorder %s25, 0
      %p53 = por %p51, %p52
      %p54 = scmp.ne.s32.totalorder %s42, %s43
      %p55 = scmp.eq.s32.totalorder %s26, 1
      %p56 = por %p54, %p55
      %p58 = scmp.ne.s32.totalorder %s43, %s57
      %p59 = scmp.eq.s32.totalorder %s26, 0
      %p60 = por %p58, %p59
      %s61 = ssub.s32 %s27, %s39
      %s62 = ssub.s32 %s28, %s35
      %s63 = sor.u32 %s61, %s62
      %p64 = scmp.eq.s32.totalorder %s63, 0
      %s66 = sadd.s32 %s65, 1
      %s67 = scalar_select %p64, %s65, %s66
      %p70 = pneg %p64
      %p71 = scmp.eq.s32.totalorder %s20, 1
      %p72 = por %p70, %p71
      %p73 = scmp.ne.s32.totalorder %s65, %s68
      %p74 = scmp.eq.s32.totalorder %s20, 0
      %p75 = por %p73, %p74
      %p76 = scmp.ne.s32.totalorder %s65, %s68
      %p77 = scmp.eq.s32.totalorder %s25, 1
      %p78 = por %p76, %p77
      %p79 = scmp.ne.s32.totalorder %s68, %s69
      %p80 = scmp.eq.s32.totalorder %s25, 0
      %p81 = por %p79, %p80
      %p82 = scmp.ne.s32.totalorder %s68, %s69
      %p83 = scmp.eq.s32.totalorder %s26, 1
      %p84 = por %p82, %p83
      %p86 = scmp.ne.s32.totalorder %s69, %s85
      %p87 = scmp.eq.s32.totalorder %s26, 0
      %p88 = por %p86, %p87
      %s89 = ssub.s32 %s27, %s39
      %s90 = ssub.s32 %s28, %s35
      %s91 = sor.u32 %s89, %s90
      %p92 = scmp.eq.s32.totalorder %s91, 0
      %s94 = sadd.s32 %s93, 1
      %s95 = scalar_select %p92, %s93, %s94
      %p98 = pneg %p92
      %p99 = scmp.eq.s32.totalorder %s20, 1
      %p100 = por %p98, %p99
      %p101 = scmp.ne.s32.totalorder %s93, %s96
      %p102 = scmp.eq.s32.totalorder %s20, 0
      %p103 = por %p101, %p102
      %p104 = scmp.ne.s32.totalorder %s93, %s96
      %p105 = scmp.eq.s32.totalorder %s25, 1
      %p106 = por %p104, %p105
      %p107 = scmp.ne.s32.totalorder %s96, %s97
      %p108 = scmp.eq.s32.totalorder %s25, 0
      %p109 = por %p107, %p108
      %p110 = scmp.ne.s32.totalorder %s96, %s97
      %p111 = scmp.eq.s32.totalorder %s26, 1
      %p112 = por %p110, %p111
      %p114 = scmp.ne.s32.totalorder %s97, %s113
      %p115 = scmp.eq.s32.totalorder %s26, 0
      %p116 = por %p114, %p115
      %s117 = ssub.s32 %s27, %s39
      %s118 = ssub.s32 %s28, %s35
      %s119 = sor.u32 %s117, %s118
      %p120 = scmp.eq.s32.totalorder %s119, 0
      %s122 = sadd.s32 %s121, 1
      %s123 = scalar_select %p120, %s121, %s122
      %p126 = pneg %p120
      %p127 = scmp.eq.s32.totalorder %s20, 1
      %p128 = por %p126, %p127
      %p129 = scmp.ne.s32.totalorder %s121, %s124
      %p130 = scmp.eq.s32.totalorder %s20, 0
      %p131 = por %p129, %p130
      %p132 = scmp.ne.s32.totalorder %s121, %s124
      %p133 = scmp.eq.s32.totalorder %s25, 1
      %p134 = por %p132, %p133
      %p135 = scmp.ne.s32.totalorder %s124, %s125
      %p136 = scmp.eq.s32.totalorder %s25, 0
      %p137 = por %p135, %p136
      %p138 = scmp.ne.s32.totalorder %s124, %s125
      %p139 = scmp.eq.s32.totalorder %s26, 1
      %p140 = por %p138, %p139
      %p142 = scmp.ne.s32.totalorder %s125, %s141
      %p143 = scmp.eq.s32.totalorder %s26, 0
      %p144 = por %p142, %p143
      %s145 = ssub.s32 %s27, %s39
      %s146 = ssub.s32 %s28, %s35
      %s147 = sor.u32 %s145, %s146
      %p148 = scmp.eq.s32.totalorder %s147, 0
      %s150 = sadd.s32 %s149, 1
      %s151 = scalar_select %p148, %s149, %s150
      %p154 = pneg %p148
      %p155 = scmp.eq.s32.totalorder %s20, 1
      %p156 = por %p154, %p155
      %p157 = scmp.ne.s32.totalorder %s149, %s152
      %p158 = scmp.eq.s32.totalorder %s20, 0
      %p159 = por %p157, %p158
      %p160 = scmp.ne.s32.totalorder %s149, %s152
      %p161 = scmp.eq.s32.totalorder %s25, 1
      %p162 = por %p160, %p161
      %p163 = scmp.ne.s32.totalorder %s152, %s153
      %p164 = scmp.eq.s32.totalorder %s25, 0
      %p165 = por %p163, %p164
      %p166 = scmp.ne.s32.totalorder %s152, %s153
      %p167 = scmp.eq.s32.totalorder %s26, 1
      %p168 = por %p166, %p167
      %p170 = scmp.ne.s32.totalorder %s153, %s169
      %p171 = scmp.eq.s32.totalorder %s26, 0
      %p172 = por %p170, %p171
      %p173 = scmp.le.s32.totalorder 1, %s20
      %p174 = scmp.lt.s32.totalorder %s20, 3
      %p175 = pnand %p173, %p174
      %p176 = pneg %p175
      // Predicated region
      $region9: #{tpu_custom_call.1} parent=5 // pred_check
        _
      $region10: #{tpu_custom_call.1} parent=5 // pred_check_branch
        %178 = sbr.rel (%p175) target = $region12
      $region11: #{tpu_custom_call.1} parent=5 // pred_region
        %s179 = ssub.s32 %s20, 1
        // Predicated region
        $region13: #{tpu_custom_call.1} parent=11 // pred_check
          %p180 = pneg %p53
        $region14: #{tpu_custom_call.1} parent=11 // pred_check_branch
          %182 = sbr.rel (%p180) target = $region16
        $region15: #{tpu_custom_call.1} parent=11 // pred_region
          _
        $region16: #{tpu_custom_call.1} parent=11 // pred_fallthru
          _
      $region12: #{tpu_custom_call.1} parent=5 // pred_fallthru
        _
      %p183 = scmp.lt.s32.totalorder %s20, 2
      // Predicated region
      $region17: #{tpu_custom_call.1} parent=5 // pred_check
        %p184 = pneg %p183
      $region18: #{tpu_custom_call.1} parent=5 // pred_check_branch
        %186 = sbr.rel (%p184) target = $region20
      $region19: #{tpu_custom_call.1} parent=5 // pred_region
        // Predicated region
        $region21: #{tpu_custom_call.1} parent=19 // pred_check
          %p187 = pneg %p75
        $region22: #{tpu_custom_call.1} parent=19 // pred_check_branch
          %189 = sbr.rel (%p187) target = $region24
        $region23: #{tpu_custom_call.1} parent=19 // pred_region
          %s190 = sand.u32 %s65, 1
          %s191 = scalar_lea.sflag [#allocation4], %s190
          %s192 = sand.u32 %s65, 1
          %s193 = smul.addr %s192, 8
          %s194 = scalar_lea.vmem [#allocation3], %s193
          %s196 = ssub.s32 128, 128
          %197 = vsyncadd %s191, %s196
          %s198 = smul.addr %s27, 4
          %s199 = sadd.s32 %s28, %s198
          %s200 = smul.addr %s199, 32
          %s201 = scalar_lea.hbm %s1, %s200
          %s202 = sshll.u32 %s194, 4
          %s203 = int_to_ptr.vmem [resolvable:$true] %s202
          %208 = dma.hbm_to_vmem [thread:$0]  %s201, 128, %s203, %s191, 32, 32, 2
        $region24: #{tpu_custom_call.1} parent=19 // pred_fallthru
          _
        // Predicated region
        $region25: #{tpu_custom_call.1} parent=19 // pred_check
          %p209 = pneg %p103
        $region26: #{tpu_custom_call.1} parent=19 // pred_check_branch
          %211 = sbr.rel (%p209) target = $region28
        $region27: #{tpu_custom_call.1} parent=19 // pred_region
          %s212 = sand.u32 %s93, 1
          %s213 = scalar_lea.sflag [#allocation7], %s212
          %s214 = sand.u32 %s93, 1
          %s215 = smul.addr %s214, 8
          %s216 = scalar_lea.vmem [#allocation6], %s215
          %s218 = ssub.s32 128, 128
          %219 = vsyncadd %s213, %s218
          %s220 = smul.addr %s27, 4
          %s221 = sadd.s32 %s28, %s220
          %s222 = smul.addr %s221, 32
          %s223 = scalar_lea.hbm %s2, %s222
          %s224 = sshll.u32 %s216, 4
          %s225 = int_to_ptr.vmem [resolvable:$true] %s224
          %230 = dma.hbm_to_vmem [thread:$0]  %s223, 128, %s225, %s213, 32, 32, 2
        $region28: #{tpu_custom_call.1} parent=19 // pred_fallthru
          _
        // Predicated region
        $region29: #{tpu_custom_call.1} parent=19 // pred_check
          %p231 = pneg %p131
        $region30: #{tpu_custom_call.1} parent=19 // pred_check_branch
          %233 = sbr.rel (%p231) target = $region32
        $region31: #{tpu_custom_call.1} parent=19 // pred_region
          %p234 = scmp.lt.s32.totalorder %s27, 1
          %s235 = scalar_select %p234, %s27, 1
          %p236 = scmp.lt.s32.totalorder %s28, 0
          %s237 = scalar_select %p236, %s28, 0
          %s238 = sadd.s32 %s237, %s235
          %s239 = smul.addr %s238, 2
          %s240 = scalar_lea.vmem %s3, %s239
        $region32: #{tpu_custom_call.1} parent=19 // pred_fallthru
          _
      $region20: #{tpu_custom_call.1} parent=5 // pred_fallthru
        _
      %p241 = scmp.le.s32.totalorder 1, %s20
      %p242 = scmp.lt.s32.totalorder %s20, 3
      %p243 = pnand %p241, %p242
      %p244 = pneg %p243
      // Predicated region
      $region33: #{tpu_custom_call.1} parent=5 // pred_check
        _
      $region34: #{tpu_custom_call.1} parent=5 // pred_check_branch
        %246 = sbr.rel (%p243) target = $region36
      $region35: #{tpu_custom_call.1} parent=5 // pred_region
        %s247 = ssub.s32 %s20, 1
        %s248 = sand.u32 %s68, 1
        %s249 = scalar_lea.sflag [#allocation4], %s248
        %s250 = sand.u32 %s68, 1
        %s251 = smul.addr %s250, 8
        %s252 = scalar_lea.vmem [#allocation3], %s251
        // Predicated region
        $region37: #{tpu_custom_call.1} parent=35 // pred_check
          %p253 = pneg %p81
        $region38: #{tpu_custom_call.1} parent=35 // pred_check_branch
          %255 = sbr.rel (%p253) target = $region40
        $region39: #{tpu_custom_call.1} parent=35 // pred_region
          %256 = dma.done %s249, 128
        $region40: #{tpu_custom_call.1} parent=35 // pred_fallthru
          _
        %s257 = sand.u32 %s96, 1
        %s258 = scalar_lea.sflag [#allocation7], %s257
        %s259 = sand.u32 %s96, 1
        %s260 = smul.addr %s259, 8
        %s261 = scalar_lea.vmem [#allocation6], %s260
        // Predicated region
        $region41: #{tpu_custom_call.1} parent=35 // pred_check
          %p262 = pneg %p109
        $region42: #{tpu_custom_call.1} parent=35 // pred_check_branch
          %264 = sbr.rel (%p262) target = $region44
        $region43: #{tpu_custom_call.1} parent=35 // pred_region
          %265 = dma.done %s258, 128
        $region44: #{tpu_custom_call.1} parent=35 // pred_fallthru
          _
        %p266 = pneg %p53
        %p267 = pneg %p50
        %s268 = sand.u32 %s68, 1
        %s269 = scalar_lea.sflag [#allocation4], %s268
        %s270 = sand.u32 %s68, 1
        %s271 = smul.addr %s270, 8
        %s272 = scalar_lea.vmem [#allocation3], %s271
        %p273 = pneg %p81
        %p274 = pneg %p78
        %s275 = sand.u32 %s96, 1
        %s276 = scalar_lea.sflag [#allocation7], %s275
        %s277 = sand.u32 %s96, 1
        %s278 = smul.addr %s277, 8
        %s279 = scalar_lea.vmem [#allocation6], %s278
        %p280 = pneg %p109
        %p281 = pneg %p106
        %p282 = scmp.lt.s32.totalorder %s29, 1
        %s283 = scalar_select %p282, %s29, 1
        %p284 = scmp.lt.s32.totalorder %s30, 0
        %s285 = scalar_select %p284, %s30, 0
        %s286 = sadd.s32 %s285, %s283
        %s287 = smul.addr %s286, 2
        %s288 = scalar_lea.vmem %s3, %s287
        %p289 = pneg %p137
        %p290 = pneg %p134
        %p291 = pneg %p165
        %p292 = pneg %p162
        %s293 = sand.u32 %s152, 1
        %s294 = scalar_lea.sflag [#allocation5], %s293
        %s295 = sand.u32 %s152, 1
        %s296 = scalar_lea.vmem [#allocation8], %s295
        %p297 = scmp.lt.s32.totalorder %s29, 1
        %s298 = scalar_select %p297, %s29, 1
        %p299 = scmp.lt.s32.totalorder %s30, 0
        %s300 = scalar_select %p299, %s30, 0
        %s301 = sadd.s32 %s300, %s298
        %s302 = smul.addr %s301, 2
        %s303 = scalar_lea.vmem %s3, %s302
        %s304 = sld [smem:[#allocation2]]
        %v305 = vld [vmem:[%s303] sm:$0x3]
        %v306 = vld [vmem:[%s252] sm:$0x3]
        %s307 = scalar_lea.vmem %s252, 2 [#allocation3]
        %v308 = vld [vmem:[%s307] sm:$0x3]
        %s309 = scalar_lea.vmem %s252, 4 [#allocation3]
        %v310 = vld [vmem:[%s309] sm:$0x3]
        %s311 = scalar_lea.vmem %s252, 6 [#allocation3]
        %v312 = vld [vmem:[%s311] sm:$0x3]
        %v313 = vld [vmem:[%s261] sm:$0x3]
        %s314 = scalar_lea.vmem %s261, 2 [#allocation6]
        %v315 = vld [vmem:[%s314] sm:$0x3]
        %s316 = scalar_lea.vmem %s261, 4 [#allocation6]
        %v317 = vld [vmem:[%s316] sm:$0x3]
        %s318 = scalar_lea.vmem %s261, 6 [#allocation6]
        %v319 = vld [vmem:[%s318] sm:$0x3]
        %v320 = vadd.f32 %v306, %v308
        %v321 = vadd.f32 %v310, %v312
        %v322 = vmul.f32 %v320, %v321
        %v323 = vadd.f32 %v313, %v315
        %v324 = vadd.f32 %v317, %v319
        %v325 = vmul.f32 %v323, %v324
        %v326 = vmin.f32 %v306, %v313
        %v327 = vmin.f32 %v308, %v315
        %v328 = vadd.f32 %v326, %v327
        %v329 = vmin.f32 %v310, %v317
        %v330 = vmin.f32 %v312, %v319
        %v331 = vadd.f32 %v329, %v330
        %v332 = vmul.f32 %v328, %v331
        %v333 = vmul.f32 %v305, %v305
        %v334 = vstv %s304
        %v335 = vmul.f32 %v305, %v334
        %v336 = vsub.f32 1.0, %v335
        %v337 = vmul.f32 %v333, %v332
        %v338 = vadd.f32 %v337, %v336
        %v339 = vadd.f32 %v322, %v325
        %v340 = vsub.f32 %v339, %v332
        %v341 = vmul.f32 %v333, %v340
        %v342 = vadd.f32 %v341, %v336
        %v343 = vlog2.pop %v342
        %v344 = vmul.f32 %v343, 0.6931472
        %v345 = vlog2.pop %v338
        %v346 = vmul.f32 %v345, 0.6931472
        %v347 = vsub.f32 %v344, %v346
        %vm348 = vcmask 1041408
        %v349 = vsel %vm348, %v347, 0.0
        %v350 = vrot.slane %v349, 4
        %v351 = vadd.f32 %v349, %v350
        %v352 = vrot.slane %v351, 2
        %v353 = vadd.f32 %v351, %v352
        %v354 = vrot.slane %v353, 1
        %v355 = vadd.f32 %v353, %v354
        %356 = vst [vmem:[%s296] sm:$0x1] %v355
        %s357 = sand.u32 %s152, 1
        %s358 = scalar_lea.sflag [#allocation5], %s357
        %s359 = sand.u32 %s152, 1
        %s360 = scalar_lea.vmem [#allocation8], %s359
        // Predicated region
        $region45: #{tpu_custom_call.1} parent=35 // pred_check
          %p361 = pneg %p162
        $region46: #{tpu_custom_call.1} parent=35 // pred_check_branch
          %363 = sbr.rel (%p361) target = $region48
        $region47: #{tpu_custom_call.1} parent=35 // pred_region
          %s365 = ssub.s32 16, 16
          %366 = vsyncadd %s358, %s365
          %s367 = sadd.s32 %s30, %s29
          %s368 = smul.addr %s367, 16
          %s369 = scalar_lea.hbm %s4, %s368
          %s371 = sshll.u32 %s360, 4
          %s372 = int_to_ptr.vmem [resolvable:$true] %s371
          %374 = dma.vmem_to_hbm [thread:$0]  %s372, 16, %s369, %s358
        $region48: #{tpu_custom_call.1} parent=35 // pred_fallthru
          _
      $region36: #{tpu_custom_call.1} parent=5 // pred_fallthru
        _
      %p375 = scmp.le.s32.totalorder 2, %s20
      // Predicated region
      $region49: #{tpu_custom_call.1} parent=5 // pred_check
        %p376 = pneg %p375
      $region50: #{tpu_custom_call.1} parent=5 // pred_check_branch
        %378 = sbr.rel (%p376) target = $region52
      $region51: #{tpu_custom_call.1} parent=5 // pred_region
        %s379 = ssub.s32 %s20, 2
        // Predicated region
        $region53: #{tpu_custom_call.1} parent=51 // pred_check
          %p380 = pneg %p168
        $region54: #{tpu_custom_call.1} parent=51 // pred_check_branch
          %382 = sbr.rel (%p380) target = $region56
        $region55: #{tpu_custom_call.1} parent=51 // pred_region
          %s383 = sand.u32 %s153, 1
          %s384 = scalar_lea.sflag [#allocation5], %s383
          %s385 = sand.u32 %s153, 1
          %s386 = scalar_lea.vmem [#allocation8], %s385
          %387 = dma.done %s384, 16
        $region56: #{tpu_custom_call.1} parent=51 // pred_fallthru
          _
      $region52: #{tpu_custom_call.1} parent=5 // pred_fallthru
        _
    $region6: #{tpu_custom_call.1} parent=1 // loop_footer
      %s24 = sadd.s32 1, %s20
    $region7: #{tpu_custom_call.1} parent=1 // loop_footer_branch
      %19 = sbr.rel target = $region3
    $region8: #{tpu_custom_call.1} parent=1 // loop_exit
      _
    %388 = vsyncpa [#allocation4], 1
    %s389 = scalar_lea.sflag [#allocation4], 1
    %390 = vsyncpa %s389, 1
    %391 = vsyncpa [#allocation7], 1
    %s392 = scalar_lea.sflag [#allocation7], 1
    %393 = vsyncpa %s392, 1
    %394 = vsyncpa [#allocation5], 1
    %s395 = scalar_lea.sflag [#allocation5], 1
    %396 = vsyncpa %s395, 1

</llo_original>
